<compile_context>
chip_gen: v6e
topology: v6e:2x2x1
jax: 0.10.0
libtpu: 0.0.40
codegen_flags: <defaults>
</compile_context>

<pallas_src>
import functools

import jax
import jax.numpy as jnp
from jax.experimental import pallas as pl
from jax.experimental.pallas import tpu as pltpu

_LANE = 128          # vreg lane width (last dim)
_SUBLANE_BF16 = 16   # bf16 sublane packing (second-to-last dim)


def _round_up(n, m):
    return ((n + m - 1) // m) * m


def _tp_mlp_kernel(x_ref, w1_ref, w2_ref, o_ref, acc_ref):
    """One (batch-block, hidden-block) step of  out = relu(x @ W1) @ W2."""
    k = pl.program_id(1)

    @pl.when(k == 0)
    def _init():
        acc_ref[...] = jnp.zeros_like(acc_ref)

    x = x_ref[...].astype(w1_ref.dtype)            # bf16 cast in-kernel (no HBM copy)
    h = jnp.dot(x, w1_ref[...], preferred_element_type=jnp.float32)
    h = jnp.maximum(h, 0.0)                        # ReLU in f32 (safe on v5e)
    acc_ref[...] += jnp.dot(h.astype(w2_ref.dtype), w2_ref[...],
                            preferred_element_type=jnp.float32)

    @pl.when(k == pl.num_programs(1) - 1)
    def _finalize():
        o_ref[...] = acc_ref[...].astype(o_ref.dtype)


def prepare_tp_mlp_weights(w1a, w1b, w2a, w2b, *, compute_dtype=jnp.bfloat16,
                           max_block_hid=1024):
    """One-time weight prep: fuse shards, cast to bf16, pad only where needed.

    Call this once at parameter-init time and cache the result; the per-call
    path then only runs the Pallas kernel.
    """
    in_features = w1a.shape[0]
    hidden = w1a.shape[1] + w1b.shape[1]
    out_features = w2a.shape[1]

    # relu(x@W1a)@W2a + relu(x@W1b)@W2b == relu(x @ [W1a|W1b]) @ [W2a ; W2b]
    w1 = jnp.concatenate([w1a, w1b], axis=1)       # (in, hidden)
    w2 = jnp.concatenate([w2a, w2b], axis=0)       # (hidden, out)

    # Hidden tile: stream hidden chunks when the layer is large; otherwise keep
    # the full (unpadded) hidden dim as one resident chunk.
    if hidden <= max_block_hid:
        block_hid = hidden
        hid_p = hidden
    else:
        block_hid = max(_LANE, (max_block_hid // _LANE) * _LANE)
        hid_p = _round_up(hidden, block_hid)

    out_p = _round_up(out_features, _LANE)          # lane-dense output path

    if hid_p == hidden and out_p == out_features:
        w1p = w1.astype(compute_dtype)
        w2p = w2.astype(compute_dtype)
    else:
        w1p = jnp.zeros((in_features, hid_p), compute_dtype)
        w1p = w1p.at[:, :hidden].set(w1.astype(compute_dtype))
        w2p = jnp.zeros((hid_p, out_p), compute_dtype)
        w2p = w2p.at[:hidden, :out_features].set(w2.astype(compute_dtype))

    meta = dict(in_features=in_features, hidden=hidden,
                out_features=out_features, block_hid=block_hid)
    return w1p, w2p, meta


def tp_mlp_apply(x, w1p, w2p, *, out_features, block_hid, block_b=256,
                 out_dtype=jnp.float32, interpret=False):
    """out = relu(x @ W1) @ W2  using weights from prepare_tp_mlp_weights."""
    B, in_features = x.shape
    hid_p = w1p.shape[1]
    out_p = w2p.shape[1]
    assert w1p.shape[0] == in_features and w2p.shape[0] == hid_p
    assert hid_p % block_hid == 0

    # Batch tile: multiple of 16 (bf16 sublane packing); for small B shrink it
    # so there are still >=2 parallel batch steps (v7x has two TensorCores).
    block_b = _round_up(max(block_b, _SUBLANE_BF16), _SUBLANE_BF16)
    if B <= block_b:
        if B >= 2 * _SUBLANE_BF16:
            block_b = _round_up(pl.cdiv(B, 2), _SUBLANE_BF16)
        else:
            block_b = B                      # tiny batch: one full-dim block
    n_b = pl.cdiv(B, block_b)
    n_k = hid_p // block_hid

    w_item = jnp.dtype(w1p.dtype).itemsize
    x_item = jnp.dtype(x.dtype).itemsize
    o_item = jnp.dtype(out_dtype).itemsize

    # Scoped-VMEM budget from actual block sizes (+ headroom).  v5e default is
    # only 16 MiB; cap at 64 MiB so the request is valid on v7x too.
    vmem_need = (2 * block_b * in_features * x_item                      # x (x2)
                 + 2 * (in_features * block_hid + block_hid * out_p) * w_item  # W (x2)
                 + 2 * block_b * out_p * o_item                          # out (x2)
                 + block_b * out_p * 4                                   # f32 acc
                 + block_b * block_hid * 4)                              # f32 h
    vmem_limit = int(min(max(vmem_need * 3 // 2 + (1 << 20), 4 << 20), 64 << 20))

    flops = 2 * B * in_features * hid_p + 2 * B * hid_p * out_p
    bytes_accessed = (B * in_features * x_item
                      + (in_features * hid_p + hid_p * out_p) * w_item
                      + B * out_p * o_item)

    out_padded = pl.pallas_call(
        _tp_mlp_kernel,
        out_shape=jax.ShapeDtypeStruct((B, out_p), out_dtype),
        grid=(n_b, n_k),
        in_specs=[
            # x: tiled on batch, resident across the hidden axis.
            pl.BlockSpec((block_b, in_features), lambda i, k: (i, 0)),
            # W1 / W2: hidden-dim chunks streamed; constant across the batch axis.
            pl.BlockSpec((in_features, block_hid), lambda i, k: (0, k)),
            pl.BlockSpec((block_hid, out_p), lambda i, k: (k, 0)),
        ],
        out_specs=pl.BlockSpec((block_b, out_p), lambda i, k: (i, 0)),
        scratch_shapes=[pltpu.VMEM((block_b, out_p), jnp.float32)],
        compiler_params=pltpu.CompilerParams(
            dimension_semantics=("parallel", "arbitrary"),
            vmem_limit_bytes=vmem_limit),
        cost_estimate=pl.CostEstimate(flops=flops, transcendentals=0,
                                      bytes_accessed=bytes_accessed),
        interpret=interpret,
    )(x, w1p, w2p)

    if out_p != out_features:
        return out_padded[:, :out_features]
    return out_padded


def tensor_parallel_mlp(x, w1a, w1b, w2a, w2b, **kwargs):
    """Convenience one-shot path (prep + apply). Prefer caching the prep."""
    w1p, w2p, meta = prepare_tp_mlp_weights(w1a, w1b, w2a, w2b)
    return tp_mlp_apply(x, w1p, w2p, out_features=meta["out_features"],
                        block_hid=meta["block_hid"], **kwargs)


def _reference_f32(x, w1a, w1b, w2a, w2b):
    return (jnp.maximum(x @ w1a, 0.0) @ w2a) + (jnp.maximum(x @ w1b, 0.0) @ w2b)


def _reference_bf16(x, w1p, w2p, out_features):
    xb = x.astype(w1p.dtype)
    h = jnp.maximum(jnp.dot(xb, w1p, preferred_element_type=jnp.float32), 0.0)
    out = jnp.dot(h.astype(w2p.dtype), w2p, preferred_element_type=jnp.float32)
    return out[:, :out_features]


if __name__ == "__main__":
    # --- Test 1: shapes implied by the module (small) -----------------------
    batch, input_size, hidden_size, output_size = 8, 32, 64, 32
    key = jax.random.PRNGKey(0)
    kx, k1a, k1b, k2a, k2b = jax.random.split(key, 5)
    x = jax.random.normal(kx, (batch, input_size), jnp.float32)
    w1a = jax.random.normal(k1a, (input_size, hidden_size // 2), jnp.float32)
    w1b = jax.random.normal(k1b, (input_size, hidden_size // 2), jnp.float32)
    w2a = jax.random.normal(k2a, (hidden_size // 2, output_size), jnp.float32)
    w2b = jax.random.normal(k2b, (hidden_size // 2, output_size), jnp.float32)

    # One-time weight prep (the piece to cache alongside the parameters).
    w1p, w2p, meta = prepare_tp_mlp_weights(w1a, w1b, w2a, w2b)
    w1p, w2p = jax.block_until_ready((w1p, w2p))

    run = jax.jit(functools.partial(tp_mlp_apply,
                                    out_features=meta["out_features"],
                                    block_hid=meta["block_hid"]))
    out = jax.block_until_ready(run(x, w1p, w2p))
    assert out.shape == (batch, output_size)
    assert jnp.allclose(out, _reference_bf16(x, w1p, w2p, output_size),
                        atol=1e-2, rtol=1e-2)
    # Original full-f32 module semantics (loose: kernel uses bf16 MXU operands).
    assert jnp.allclose(out, _reference_f32(x, w1a, w1b, w2a, w2b),
                        atol=1.0, rtol=1e-1)

    # --- Test 2: exercise ragged batch + hidden-dim accumulation path -------
    b2, in2, hid2, out2 = 40, 32, 256, 48
    k2 = jax.random.PRNGKey(1)
    kx2, ka, kb, kc, kd = jax.random.split(k2, 5)
    x2 = jax.random.normal(kx2, (b2, in2), jnp.float32)
    w1a2 = jax.random.normal(ka, (in2, hid2 // 2), jnp.float32)
    w1b2 = jax.random.normal(kb, (in2, hid2 // 2), jnp.float32)
    w2a2 = jax.random.normal(kc, (hid2 // 2, out2), jnp.float32)
    w2b2 = jax.random.normal(kd, (hid2 // 2, out2), jnp.float32)
    w1p2, w2p2, meta2 = prepare_tp_mlp_weights(w1a2, w1b2, w2a2, w2b2,
                                               max_block_hid=128)
    out2_k = jax.block_until_ready(
        tp_mlp_apply(x2, w1p2, w2p2, out_features=meta2["out_features"],
                     block_hid=meta2["block_hid"]))
    assert out2_k.shape == (b2, out2)
    assert jnp.allclose(out2_k, _reference_bf16(x2, w1p2, w2p2, out2),
                        atol=5e-2, rtol=1e-2)
    assert jnp.allclose(out2_k, _reference_f32(x2, w1a2, w1b2, w2a2, w2b2),
                        atol=5.0, rtol=1e-1)

    print("KERNEL_OK")
</pallas_src>

<mosaic_0001>
module attributes {stable_mosaic.version = 11 : i64} {
  func.func @_tp_mlp_kernel(%arg0: i32, %arg1: i32, %arg2: memref<8x32xf32, #tpu.memory_space<vmem>>, %arg3: memref<32x64xbf16, #tpu.memory_space<vmem>>, %arg4: memref<64x128xbf16, #tpu.memory_space<vmem>>, %arg5: memref<8x128xf32, #tpu.memory_space<vmem>>, %arg6: memref<8x128xf32, #tpu.memory_space<vmem>>) attributes {dimension_semantics = [#tpu.dimension_semantics<parallel>, #tpu.dimension_semantics<arbitrary>], iteration_bounds = array<i64: 1, 1>, scalar_prefetch = 0 : i64, scratch_operands = 1 : i64, tpu.core_type = #tpu.core_type<tc>, window_params = [{transform_indices = @transform_0, window_bounds = array<i64: 8, 32>}, {transform_indices = @transform_1, window_bounds = array<i64: 32, 64>}, {transform_indices = @transform_2, window_bounds = array<i64: 64, 128>}, {transform_indices = @transform_3, window_bounds = array<i64: 8, 128>}]} {
    %c0_i32 = arith.constant 0 : i32
    %0 = arith.cmpi eq, %arg1, %c0_i32 : i32
    %1 = arith.extui %0 : i1 to i32
    %c0_i32_0 = arith.constant 0 : i32
    %2 = arith.cmpi ne, %1, %c0_i32_0 : i32
    scf.if %2 {
      %cst_14 = arith.constant 0.000000e+00 : f32
      %18 = vector.broadcast %cst_14 : f32 to vector<8x128xf32>
      %c0_15 = arith.constant 0 : index
      %c0_16 = arith.constant 0 : index
      %19 = vector.load %arg6[%c0_15, %c0_16] : memref<8x128xf32, #tpu.memory_space<vmem>>, vector<8x128xf32>
      tpu.vector_store %arg6[%c0_15, %c0_16], %18 {strides = array<i32>} : memref<8x128xf32, #tpu.memory_space<vmem>>, vector<8x128xf32>,
    } else {
    }
    %c0 = arith.constant 0 : index
    %c0_1 = arith.constant 0 : index
    %3 = vector.load %arg2[%c0, %c0_1] : memref<8x32xf32, #tpu.memory_space<vmem>>, vector<8x32xf32>
    %4 = arith.truncf %3 : vector<8x32xf32> to vector<8x32xbf16>
    %c0_2 = arith.constant 0 : index
    %c0_3 = arith.constant 0 : index
    %5 = vector.load %arg3[%c0_2, %c0_3] : memref<32x64xbf16, #tpu.memory_space<vmem>>, vector<32x64xbf16>
    %cst = arith.constant dense<0.000000e+00> : vector<8x64xf32>
    %6 = tpu.matmul %4, %5, %cst {dimension_numbers = #tpu.dot_dimension_numbers<[1], [0], [0], [1], [0, 0, 1, 1], [], []>} : vector<8x32xbf16>, vector<32x64xbf16>, vector<8x64xf32> -> vector<8x64xf32>
    %cst_4 = arith.constant 0.000000e+00 : f32
    %7 = vector.broadcast %cst_4 : f32 to vector<8x64xf32>
    %8 = arith.maximumf %6, %7 : vector<8x64xf32>
    %c0_5 = arith.constant 0 : index
    %c0_6 = arith.constant 0 : index
    %9 = vector.load %arg6[%c0_5, %c0_6] : memref<8x128xf32, #tpu.memory_space<vmem>>, vector<8x128xf32>
    %10 = arith.truncf %8 : vector<8x64xf32> to vector<8x64xbf16>
    %c0_7 = arith.constant 0 : index
    %c0_8 = arith.constant 0 : index
    %11 = vector.load %arg4[%c0_7, %c0_8] : memref<64x128xbf16, #tpu.memory_space<vmem>>, vector<64x128xbf16>
    %cst_9 = arith.constant dense<0.000000e+00> : vector<8x128xf32>
    %12 = tpu.matmul %10, %11, %cst_9 {dimension_numbers = #tpu.dot_dimension_numbers<[1], [0], [0], [1], [0, 0, 1, 1], [], []>} : vector<8x64xbf16>, vector<64x128xbf16>, vector<8x128xf32> -> vector<8x128xf32>
    %13 = arith.addf %9, %12 : vector<8x128xf32>
    %c0_10 = arith.constant 0 : index
    %c0_11 = arith.constant 0 : index
    %14 = vector.load %arg6[%c0_10, %c0_11] : memref<8x128xf32, #tpu.memory_space<vmem>>, vector<8x128xf32>
    tpu.vector_store %arg6[%c0_10, %c0_11], %13 {strides = array<i32>} : memref<8x128xf32, #tpu.memory_space<vmem>>, vector<8x128xf32>,
    %c0_i32_12 = arith.constant 0 : i32
    %15 = arith.cmpi eq, %arg1, %c0_i32_12 : i32
    %16 = arith.extui %15 : i1 to i32
    %c0_i32_13 = arith.constant 0 : i32
    %17 = arith.cmpi ne, %16, %c0_i32_13 : i32
    scf.if %17 {
      %c0_14 = arith.constant 0 : index
      %c0_15 = arith.constant 0 : index
      %18 = vector.load %arg6[%c0_14, %c0_15] : memref<8x128xf32, #tpu.memory_space<vmem>>, vector<8x128xf32>
      %c0_16 = arith.constant 0 : index
      %c0_17 = arith.constant 0 : index
      %19 = vector.load %arg5[%c0_16, %c0_17] : memref<8x128xf32, #tpu.memory_space<vmem>>, vector<8x128xf32>
      tpu.vector_store %arg5[%c0_16, %c0_17], %18 {strides = array<i32>} : memref<8x128xf32, #tpu.memory_space<vmem>>, vector<8x128xf32>,
    } else {
    }
    return
  }
  func.func @transform_0(%arg0: i32, %arg1: i32) -> (i32, i32) {
    %c0_i32 = arith.constant 0 : i32
    %c0_i32_0 = arith.constant 0 : i32
    return %arg0, %c0_i32 : i32, i32
  }
  func.func @transform_1(%arg0: i32, %arg1: i32) -> (i32, i32) {
    %c0_i32 = arith.constant 0 : i32
    %c0_i32_0 = arith.constant 0 : i32
    return %c0_i32, %arg1 : i32, i32
  }
  func.func @transform_2(%arg0: i32, %arg1: i32) -> (i32, i32) {
    %c0_i32 = arith.constant 0 : i32
    %c0_i32_0 = arith.constant 0 : i32
    return %arg1, %c0_i32 : i32, i32
  }
  func.func @transform_3(%arg0: i32, %arg1: i32) -> (i32, i32) {
    %c0_i32 = arith.constant 0 : i32
    %c0_i32_0 = arith.constant 0 : i32
    return %arg0, %c0_i32 : i32, i32
  }
}

</mosaic_0001>

<llo_original>
// kernel: tp_mlp_apply.1
$region0: #{tp_mlp_apply.1}
  #allocation0 [shape = 'u32[]', space=smem, size = 0x4, offset = 0x4, fixed_abs, tag = 'smem constant byte address 0x4 - core index']
  #allocation1 [shape = 'u32[144,128]{1,0:T(1,128)}', space=vmem, size = 0x12000, scoped, tag = 'internal scratch']
  #allocation2 [shape = 'f32[8,128]{1,0:T(8,128)}', space=vmem, size = 0x1000, scoped, tag = 'scratch operand']
  %s0 = inlined_call_operand.hbm [shape: f32[8,32], index: 0, kind: input, shape index: {}]
  %s1 = inlined_call_operand.hbm [shape: bf16[32,64], index: 1, kind: input, shape index: {}]
  %s2 = inlined_call_operand.hbm [shape: bf16[64,128], index: 2, kind: input, shape index: {}]
  %s3 = inlined_call_operand.hbm [shape: f32[8,128], index: 3, kind: output, shape index: {}]
  %s4 = sld [smem:[#allocation0]]
  $region42: #{tp_mlp_apply.1} parent=0
    _
  %s6 = ssub.s32 1, %s4
  %s7 = scalar_select 0, %s6, %s4
  $region1: #{tp_mlp_apply.1} parent=0
    #allocation3 [shape = 'u8[4096]{0}', space=vmem, size = 0x1000, scoped, tag = 'input window, operand 0, single buffered']
    #allocation4 [shape = 's32[1]{0}', space=sflag, size = 0x4, scoped, tag = 'scoped memory for tp_mlp_apply.1']
    #allocation5 [shape = 's32[1]{0}', space=sflag, size = 0x4, scoped, tag = 'scoped memory for tp_mlp_apply.1']
    #allocation6 [shape = 'u8[8192]{0}', space=vmem, size = 0x2000, scoped, tag = 'input window, operand 1, single buffered']
    #allocation7 [shape = 's32[1]{0}', space=sflag, size = 0x4, scoped, tag = 'scoped memory for tp_mlp_apply.1']
    #allocation8 [shape = 'u8[16384]{0}', space=vmem, size = 0x4000, scoped, tag = 'input window, operand 2, single buffered']
    #allocation9 [shape = 'u8[4096]{0}', space=vmem, size = 0x1000, scoped, tag = 'output window, operand 0, single buffered']
    %8 = vsyncpa [#allocation4], 0
    %9 = vsyncpa [#allocation7], 0
    %10 = vsyncpa [#allocation5], 0
    // Predicated region
    $region2: #{tp_mlp_apply.1} parent=1 // pred_check
      _
    $region3: #{tp_mlp_apply.1} parent=1 // pred_check_branch
      %12 = sbr.rel (0) target = $region5
    $region4: #{tp_mlp_apply.1} parent=1 // pred_region
      %s14 = ssub.s32 128, 128
      %15 = vsyncadd [#allocation4], %s14
      %s17 = sshll.u32 [#allocation3], 4
      %s18 = int_to_ptr.vmem [resolvable:$true] %s17
      %20 = dma.hbm_to_vmem [thread:$0]  %s0, 128, %s18, [#allocation4]
    $region5: #{tp_mlp_apply.1} parent=1 // pred_fallthru
      _
    // Predicated region
    $region6: #{tp_mlp_apply.1} parent=1 // pred_check
      _
    $region7: #{tp_mlp_apply.1} parent=1 // pred_check_branch
      %22 = sbr.rel (0) target = $region9
    $region8: #{tp_mlp_apply.1} parent=1 // pred_region
      %s24 = ssub.s32 256, 256
      %25 = vsyncadd [#allocation7], %s24
      %s26 = sshll.u32 [#allocation6], 4
      %s27 = int_to_ptr.vmem [resolvable:$true] %s26
      %32 = dma.hbm_to_vmem [thread:$0]  %s1, 256, %s27, [#allocation7], 64, 64, 4
    $region9: #{tp_mlp_apply.1} parent=1 // pred_fallthru
      _
    // Predicated region
    $region10: #{tp_mlp_apply.1} parent=1 // pred_check
      _
    $region11: #{tp_mlp_apply.1} parent=1 // pred_check_branch
      %34 = sbr.rel (0) target = $region13
    $region12: #{tp_mlp_apply.1} parent=1 // pred_region
      %s36 = ssub.s32 512, 512
      %37 = vsyncadd [#allocation7], %s36
      %s38 = sshll.u32 [#allocation8], 4
      %s39 = int_to_ptr.vmem [resolvable:$true] %s38
      %44 = dma.hbm_to_vmem [thread:$0]  %s2, 512, %s39, [#allocation7], 64, 64, 4
    $region13: #{tp_mlp_apply.1} parent=1 // pred_fallthru
      _
    // Predicated region
    $region14: #{tp_mlp_apply.1} parent=1 // pred_check
      _
    $region15: #{tp_mlp_apply.1} parent=1 // pred_check_branch
      %46 = sbr.rel (0) target = $region17
    $region16: #{tp_mlp_apply.1} parent=1 // pred_region
      %47 = dma.done [#allocation4], 128
    $region17: #{tp_mlp_apply.1} parent=1 // pred_fallthru
      _
    // Predicated region
    $region18: #{tp_mlp_apply.1} parent=1 // pred_check
      _
    $region19: #{tp_mlp_apply.1} parent=1 // pred_check_branch
      %49 = sbr.rel (0) target = $region21
    $region20: #{tp_mlp_apply.1} parent=1 // pred_region
      %50 = dma.done [#allocation7], 256
    $region21: #{tp_mlp_apply.1} parent=1 // pred_fallthru
      _
    // Predicated region
    $region22: #{tp_mlp_apply.1} parent=1 // pred_check
      _
    $region23: #{tp_mlp_apply.1} parent=1 // pred_check_branch
      %52 = sbr.rel (0) target = $region25
    $region24: #{tp_mlp_apply.1} parent=1 // pred_region
      %53 = dma.done [#allocation7], 512
    $region25: #{tp_mlp_apply.1} parent=1 // pred_fallthru
      _
    %p55 = scmp.eq.s32.totalorder 0, 0
    // Predicated region
    $region26: #{tp_mlp_apply.1} parent=1 // pred_check
      %p56 = pneg %p55
    $region27: #{tp_mlp_apply.1} parent=1 // pred_check_branch
      %58 = sbr.rel (%p56) target = $region29
    $region28: #{tp_mlp_apply.1} parent=1 // pred_region
      %59 = vst [vmem:[#allocation2] sm:$0xff] 0.0
    $region29: #{tp_mlp_apply.1} parent=1 // pred_fallthru
      _
    %v60 = vld [vmem:[#allocation3] sm:$0xff]
    %v61 = vpack.c.bf16 %v60, %v60
    %v62 = vld [vmem:[#allocation6] sm:$0xf]
    %v63 = vld [vmem:[#allocation6 + $0x4] sm:$0xf]
    %v64 = vld [vmem:[#allocation6 + $0x8] sm:$0xf]
    %v65 = vld [vmem:[#allocation6 + $0xc] sm:$0xf]
    %v70 = vunpack.c.l.b16 %v62
    %v71 = vunpack.c.l.b16 %v63
    %v72 = vunpack.c.l.b16 %v64
    %v73 = vunpack.c.l.b16 %v65
    %v74 = vpack.c.b16 %v71, %v70
    %v75 = vpack.c.b16 %v73, %v72
    %vm78 = vcmask 261120
    %v80 = vsel %vm78, %v61, 0
    %82 = vmatprep.subr.bf16.mxu0 0
    %83 = vmatpush1.bf16.msra.mxu0 0
    %84 = vmatprep.subr.bf16.mxu0 0
    %85 = vmatpush1.bf16.msra.mxu0 0
    %86 = vmatprep.subr.bf16.mxu0 0
    %87 = vmatpush1.bf16.msra.mxu0 0
    %88 = vmatprep.subr.bf16.mxu0 0
    %89 = vmatpush1.bf16.msra.mxu0 0
    %90 = vmatprep.subr.bf16.mxu0 0
    %91 = vmatpush1.bf16.msra.mxu0 0
    %92 = vmatprep.subr.bf16.mxu0 0
    %93 = vmatpush1.bf16.msra.mxu0 0
    %94 = vmatprep.subr.bf16.mxu0 0
    %95 = vmatpush1.bf16.msra.mxu0 %v75
    %96 = vmatprep.subr.bf16.mxu0 0
    %97 = vmatpush1.bf16.msra.mxu0 %v74
    %98 = vmatprep.subr.bf16.mxu0 0
    %99 = vmatpush2.bf16.msra.mxu0 0
    %100 = vmatprep.subr.bf16.mxu0 0
    %101 = vmatpush2.bf16.msra.mxu0 0
    %102 = vmatprep.subr.bf16.mxu0 0
    %103 = vmatpush2.bf16.msra.mxu0 0
    %104 = vmatprep.subr.bf16.mxu0 0
    %105 = vmatpush2.bf16.msra.mxu0 0
    %106 = vmatprep.subr.bf16.mxu0 0
    %107 = vmatpush2.bf16.msra.mxu0 0
    %108 = vmatprep.subr.bf16.mxu0 0
    %109 = vmatpush2.bf16.msra.mxu0 0
    %110 = vmatprep.subr.bf16.mxu0 0
    %111 = vmatpush2.bf16.msra.mxu0 0
    %112 = vmatprep.subr.bf16.mxu0 0
    %113 = vmatpush2.bf16.msra.mxu0 0
    %114 = vmatprep.mubr.bf16.mxu0 0
    %115 = vmatmul.mubr.bf16.gmra.mxu0 %v80
    %v116 = vpop.f32.mrf.mxu0
    %v117 = vadd.f32 0.0, %v116
    %v118 = vpop.f32.mrf.mxu0
    %v119 = vpop.f32.mrf.mxu0
    %v120 = vpop.f32.mrf.mxu0
    %121 = vdwg.mxu0
    %v122 = vmax.f32 %v117, 0.0
    %v123 = vld [vmem:[#allocation2] sm:$0xff]
    %v124 = vpack.c.bf16 %v122, %v122
    %v125 = vld [vmem:[#allocation8] sm:$0xf]
    %v126 = vld [vmem:[#allocation8 + $0x4] sm:$0xf]
    %v127 = vld [vmem:[#allocation8 + $0x8] sm:$0xf]
    %v128 = vld [vmem:[#allocation8 + $0xc] sm:$0xf]
    %v129 = vld [vmem:[#allocation8 + $0x10] sm:$0xf]
    %v130 = vld [vmem:[#allocation8 + $0x14] sm:$0xf]
    %v131 = vld [vmem:[#allocation8 + $0x18] sm:$0xf]
    %v132 = vld [vmem:[#allocation8 + $0x1c] sm:$0xf]
    %v141 = vunpack.c.l.b16 %v125
    %v142 = vunpack.c.l.b16 %v126
    %v143 = vunpack.c.l.b16 %v127
    %v144 = vunpack.c.l.b16 %v128
    %v145 = vunpack.c.l.b16 %v129
    %v146 = vunpack.c.l.b16 %v130
    %v147 = vunpack.c.l.b16 %v131
    %v148 = vunpack.c.l.b16 %v132
    %v149 = vpack.c.b16 %v142, %v141
    %v150 = vpack.c.b16 %v144, %v143
    %v151 = vpack.c.b16 %v146, %v145
    %v152 = vpack.c.b16 %v148, %v147
    %vm157 = vcmask 523264
    %v159 = vsel %vm157, %v124, 0
    %161 = vmatprep.subr.bf16.mxu0 0
    %162 = vmatpush1.bf16.msra.mxu0 0
    %163 = vmatprep.subr.bf16.mxu0 0
    %164 = vmatpush1.bf16.msra.mxu0 0
    %165 = vmatprep.subr.bf16.mxu0 0
    %166 = vmatpush1.bf16.msra.mxu0 0
    %167 = vmatprep.subr.bf16.mxu0 0
    %168 = vmatpush1.bf16.msra.mxu0 0
    %169 = vmatprep.subr.bf16.mxu0 0
    %170 = vmatpush1.bf16.msra.mxu0 %v152
    %171 = vmatprep.subr.bf16.mxu0 0
    %172 = vmatpush1.bf16.msra.mxu0 %v151
    %173 = vmatprep.subr.bf16.mxu0 0
    %174 = vmatpush1.bf16.msra.mxu0 %v150
    %175 = vmatprep.subr.bf16.mxu0 0
    %176 = vmatpush1.bf16.msra.mxu0 %v149
    %177 = vmatprep.subr.bf16.mxu0 0
    %178 = vmatpush2.bf16.msra.mxu0 0
    %179 = vmatprep.subr.bf16.mxu0 0
    %180 = vmatpush2.bf16.msra.mxu0 0
    %181 = vmatprep.subr.bf16.mxu0 0
    %182 = vmatpush2.bf16.msra.mxu0 0
    %183 = vmatprep.subr.bf16.mxu0 0
    %184 = vmatpush2.bf16.msra.mxu0 0
    %185 = vmatprep.subr.bf16.mxu0 0
    %186 = vmatpush2.bf16.msra.mxu0 0
    %187 = vmatprep.subr.bf16.mxu0 0
    %188 = vmatpush2.bf16.msra.mxu0 0
    %189 = vmatprep.subr.bf16.mxu0 0
    %190 = vmatpush2.bf16.msra.mxu0 0
    %191 = vmatprep.subr.bf16.mxu0 0
    %192 = vmatpush2.bf16.msra.mxu0 0
    %193 = vmatprep.mubr.bf16.mxu0 0
    %194 = vmatmul.mubr.bf16.gmra.mxu0 %v159
    %v195 = vpop.f32.mrf.mxu0
    %v196 = vadd.f32 0.0, %v195
    %v197 = vpop.f32.mrf.mxu0
    %v198 = vpop.f32.mrf.mxu0
    %v199 = vpop.f32.mrf.mxu0
    %200 = vdwg.mxu0
    %v201 = vadd.f32 %v123, %v196
    %202 = vst [vmem:[#allocation2] sm:$0xff] %v201
    // Predicated region
    $region30: #{tp_mlp_apply.1} parent=1 // pred_check
      %p203 = pneg %p55
    $region31: #{tp_mlp_apply.1} parent=1 // pred_check_branch
      %205 = sbr.rel (%p203) target = $region33
    $region32: #{tp_mlp_apply.1} parent=1 // pred_region
      %v206 = vld [vmem:[#allocation2] sm:$0xff]
      %207 = vst [vmem:[#allocation9] sm:$0xff] %v206
    $region33: #{tp_mlp_apply.1} parent=1 // pred_fallthru
      _
    // Predicated region
    $region34: #{tp_mlp_apply.1} parent=1 // pred_check
      _
    $region35: #{tp_mlp_apply.1} parent=1 // pred_check_branch
      %209 = sbr.rel (0) target = $region37
    $region36: #{tp_mlp_apply.1} parent=1 // pred_region
      %s211 = ssub.s32 128, 128
      %212 = vsyncadd [#allocation5], %s211
      %s214 = sshll.u32 [#allocation9], 4
      %s215 = int_to_ptr.vmem [resolvable:$true] %s214
      %217 = dma.vmem_to_hbm [thread:$0]  %s215, 128, %s3, [#allocation5]
    $region37: #{tp_mlp_apply.1} parent=1 // pred_fallthru
      _
    // Predicated region
    $region38: #{tp_mlp_apply.1} parent=1 // pred_check
      _
    $region39: #{tp_mlp_apply.1} parent=1 // pred_check_branch
      %219 = sbr.rel (0) target = $region41
    $region40: #{tp_mlp_apply.1} parent=1 // pred_region
      %220 = dma.done [#allocation5], 128
    $region41: #{tp_mlp_apply.1} parent=1 // pred_fallthru
      _
    %221 = vsyncpa [#allocation4], 1
    %222 = vsyncpa [#allocation7], 1
    %223 = vsyncpa [#allocation5], 1

</llo_original>
